<compile_context>
chip_gen: v6e
topology: v6e:2x2x1
jax: 0.10.0
libtpu: 0.0.40
codegen_flags: <defaults>
</compile_context>

<pallas_src>
import jax
import jax.numpy as jnp
from jax import lax
from jax.experimental import pallas as pl
from jax.experimental.pallas import tpu as pltpu


def _round_up(n, m):
    return ((n + m - 1) // m) * m


def _make_kernel(num_hidden):
    """Fused MLP kernel: `num_hidden` (Linear+foldedBN+ReLU) blocks + Linear(.,1)."""

    def kernel(*refs):
        x_ref = refs[0]            # (TM, F)   batch-major x tile straight from HBM
        o_ref = refs[-1]           # (1, TM)   lane-dense output row
        p = refs[1:-1]             # (w, b) per hidden layer, then (w_out_col, b_out)

        h = None
        for l in range(num_hidden):
            w_ref = p[2 * l]       # (nodes, prev)  BN-folded weight, native layout
            b_ref = p[2 * l + 1]   # (nodes, 1)     BN-folded bias column
            if l == 0:
                # Contract W's `prev` dim against x's feature dim directly:
                # (nodes, F) x (TM, F) -> (nodes, TM).  Activations are
                # feature-major (batch in lanes) from the very first layer.
                h = lax.dot_general(
                    w_ref[...], x_ref[...],
                    dimension_numbers=(((1,), (1,)), ((), ())),
                    preferred_element_type=jnp.float32)
            else:
                h = jnp.dot(w_ref[...], h, preferred_element_type=jnp.float32)
            # Folded-BN bias + ReLU on lane-dense (nodes, TM) tiles (VPU).
            # Dropout = identity in eval mode.
            h = jnp.maximum(h + b_ref[...], 0.0)
        if num_hidden == 0:
            h = x_ref[...].T       # degenerate case: head acts on raw features

        w_out_ref = p[-2]          # (H_last, 1) head weight column (VMEM)
        b_out_ref = p[-1]          # (1, 1)      head bias scalar  (SMEM)
        # Output head: VPU multiply + sublane (XLU) reduce -> lane-dense (1, TM)
        # row instead of a 1-column MXU matmul / masked (TM, 1) store.
        o = jnp.sum(h * w_out_ref[...], axis=0, keepdims=True) + b_out_ref[0, 0]
        o_ref[...] = o.astype(o_ref.dtype)

    return kernel


def deepsurv_forward(x, folded_params, *, tile_m=None):
    """Fused DeepSurvNet forward (eval mode) as one batch-tiled pallas_call.

    folded_params: flat tuple (w1, b1, ..., wL, bL, w_out_col, b_out) where
      wl        : (nodes, prev)  Linear weight (native layout) with BN scale folded in
      bl        : (nodes, 1)     Linear bias with BN scale/shift folded in
      w_out_col : (prev, 1)      output-head weight column
      b_out     : (1, 1)         output-head bias
    """
    num_hidden = (len(folded_params) - 2) // 2
    N, F = x.shape

    # Batch tile = sublane dim of the x block and lane dim of the output block,
    # so it must be a multiple of 128.  Default: one tile for small N, else an
    # even, small tile count (>=2) so both v7x TensorCores get equal work.
    if tile_m is None:
        if N <= 2048:
            tile_m = _round_up(N, 128)
        else:
            n_tiles = _round_up(pl.cdiv(N, 4096), 2)
            tile_m = _round_up(pl.cdiv(N, n_tiles), 128)
    tile_m = max(128, _round_up(int(tile_m), 128))   # guard user-supplied values
    grid = (pl.cdiv(N, tile_m),)                     # no host-side padding

    operands = []
    in_specs = [pl.BlockSpec((tile_m, F), lambda i: (i, 0))]     # x batch tile
    for l in range(num_hidden):
        w = folded_params[2 * l].astype(jnp.float32)
        b = folded_params[2 * l + 1].astype(jnp.float32)
        operands += [w, b]
        in_specs.append(pl.BlockSpec(w.shape, lambda i: (0, 0)))  # pinned weights
        in_specs.append(pl.BlockSpec(b.shape, lambda i: (0, 0)))
    w_out_col = folded_params[-2].astype(jnp.float32)
    b_out = folded_params[-1].astype(jnp.float32).reshape(1, 1)
    operands += [w_out_col, b_out]
    in_specs.append(pl.BlockSpec(w_out_col.shape, lambda i: (0, 0)))
    # Scalar head bias in SMEM: read on the scalar path, no padded VMEM tile.
    in_specs.append(pl.BlockSpec((1, 1), lambda i: (0, 0),
                                 memory_space=pltpu.MemorySpace.SMEM))

    # Lane-dense output: (1, tile_m) blocks of a (1, N) row; wrapper reshapes.
    out_spec = pl.BlockSpec((1, tile_m), lambda i: (0, i))

    out = pl.pallas_call(
        _make_kernel(num_hidden),
        out_shape=jax.ShapeDtypeStruct((1, N), jnp.float32),
        grid=grid,
        in_specs=in_specs,
        out_specs=out_spec,
        compiler_params=pltpu.CompilerParams(
            # independent batch tiles -> eligible for cross-core sharding
            dimension_semantics=("parallel",)),
    )(x, *operands)

    return out.reshape(N, 1)


def make_raw_params(key, in_features, hidden_layers, eps=1e-5):
    """Deterministic PyTorch-style parameters matching DeepSurvNet (eval mode)."""
    raw = []
    keys = jax.random.split(key, 2 * (len(hidden_layers) + 1))
    k = 0
    prev = in_features
    for nodes in hidden_layers:
        w = jax.random.normal(keys[k], (nodes, prev), jnp.float32) * 0.1
        k += 1
        b = jax.random.normal(keys[k], (nodes,), jnp.float32) * 0.01
        k += 1
        gamma = 1.0 + 0.05 * jnp.arange(nodes, dtype=jnp.float32) / nodes
        beta = 0.01 * jnp.arange(nodes, dtype=jnp.float32)
        run_mean = 0.02 * jnp.arange(nodes, dtype=jnp.float32)
        run_var = 1.0 + 0.1 * jnp.arange(nodes, dtype=jnp.float32) / nodes
        raw.append((w, b, gamma, beta, run_mean, run_var))
        prev = nodes
    w_out = jax.random.normal(keys[k], (1, prev), jnp.float32) * 0.1
    k += 1
    b_out = jax.random.normal(keys[k], (1,), jnp.float32) * 0.01
    return raw, (w_out, b_out), eps


def fold_params(raw, head, eps):
    """Fold eval-mode BatchNorm1d into each Linear (exact algebraic fold).

    Weights stay in native (nodes, prev) layout (feature-major kernel)."""
    flat = []
    for (w, b, gamma, beta, run_mean, run_var) in raw:
        scale = gamma / jnp.sqrt(run_var + eps)               # (nodes,)
        shift = beta - run_mean * scale                       # (nodes,)
        w_f = w * scale[:, None]                              # (nodes, prev)
        b_f = (b * scale + shift)[:, None]                    # (nodes, 1)
        flat += [w_f, b_f]
    w_out, b_out = head
    flat += [w_out.reshape(-1, 1), b_out.reshape(1, 1)]       # column + scalar
    return tuple(flat)


def reference_forward(x, raw, head, eps):
    """Pure-JAX reference of the unfolded eval-mode module."""
    h = x
    for (w, b, gamma, beta, run_mean, run_var) in raw:
        h = h @ w.T + b
        h = (h - run_mean) / jnp.sqrt(run_var + eps) * gamma + beta
        h = jnp.maximum(h, 0.0)                               # ReLU; Dropout = identity
    w_out, b_out = head
    return h @ w_out.T + b_out


if __name__ == "__main__":
    in_features = 16
    hidden_layers = [32, 32]
    batch = 8

    key = jax.random.PRNGKey(0)
    k_x, k_p, k_x2 = jax.random.split(key, 3)
    x = jax.random.normal(k_x, (batch, in_features), jnp.float32)
    raw, head, eps = make_raw_params(k_p, in_features, hidden_layers)
    params = fold_params(raw, head, eps)

    # Small batch (single, partially-masked tile).
    out = jax.block_until_ready(deepsurv_forward(x, params))
    ref = reference_forward(x, raw, head, eps)
    assert out.shape == (batch, 1)
    assert jnp.allclose(out, ref, atol=1e-4, rtol=1e-4)

    # Larger batch exercising a multi-step grid + masked tail tile (1200/512 -> 3 steps).
    x_big = jax.random.normal(k_x2, (1200, in_features), jnp.float32)
    out_big = jax.block_until_ready(deepsurv_forward(x_big, params, tile_m=512))
    ref_big = reference_forward(x_big, raw, head, eps)
    assert out_big.shape == (1200, 1)
    assert jnp.allclose(out_big, ref_big, atol=1e-4, rtol=1e-4)

    # Default (auto) tile choice on the larger batch as well.
    out_auto = jax.block_until_ready(deepsurv_forward(x_big, params))
    assert jnp.allclose(out_auto, ref_big, atol=1e-4, rtol=1e-4)

    print("KERNEL_OK")
</pallas_src>

<mosaic_0001>
module attributes {stable_mosaic.version = 11 : i64} {
  func.func @kernel(%arg0: i32, %arg1: memref<128x16xf32, #tpu.memory_space<vmem>>, %arg2: memref<32x16xf32, #tpu.memory_space<vmem>>, %arg3: memref<32x1xf32, #tpu.memory_space<vmem>>, %arg4: memref<32x32xf32, #tpu.memory_space<vmem>>, %arg5: memref<32x1xf32, #tpu.memory_space<vmem>>, %arg6: memref<32x1xf32, #tpu.memory_space<vmem>>, %arg7: memref<1x1xf32, #tpu.memory_space<smem>>, %arg8: memref<1x128xf32, #tpu.memory_space<vmem>>) attributes {dimension_semantics = [#tpu.dimension_semantics<parallel>], iteration_bounds = array<i64: 1>, scalar_prefetch = 0 : i64, scratch_operands = 0 : i64, tpu.core_type = #tpu.core_type<tc>, window_params = [{transform_indices = @transform_0, window_bounds = array<i64: 128, 16>}, {pipeline_mode = #tpu.pipeline_mode<synchronous>, transform_indices = @transform_1, window_bounds = array<i64: 32, 16>}, {pipeline_mode = #tpu.pipeline_mode<synchronous>, transform_indices = @transform_2, window_bounds = array<i64: 32, 1>}, {pipeline_mode = #tpu.pipeline_mode<synchronous>, transform_indices = @transform_3, window_bounds = array<i64: 32, 32>}, {pipeline_mode = #tpu.pipeline_mode<synchronous>, transform_indices = @transform_4, window_bounds = array<i64: 32, 1>}, {pipeline_mode = #tpu.pipeline_mode<synchronous>, transform_indices = @transform_5, window_bounds = array<i64: 32, 1>}, {transform_indices = @transform_6, window_bounds = array<i64: 1, 1>}, {transform_indices = @transform_7, window_bounds = array<i64: 1, 128>}]} {
    %c0 = arith.constant 0 : index
    %c0_0 = arith.constant 0 : index
    %0 = vector.load %arg2[%c0, %c0_0] : memref<32x16xf32, #tpu.memory_space<vmem>>, vector<32x16xf32>
    %c0_1 = arith.constant 0 : index
    %c0_2 = arith.constant 0 : index
    %1 = vector.load %arg1[%c0_1, %c0_2] : memref<128x16xf32, #tpu.memory_space<vmem>>, vector<128x16xf32>
    %cst = arith.constant dense<0.000000e+00> : vector<32x128xf32>
    %2 = tpu.matmul %0, %1, %cst {dimension_numbers = #tpu.dot_dimension_numbers<[1], [1], [0], [0], [0, 0, 1, 0], [], []>} : vector<32x16xf32>, vector<128x16xf32>, vector<32x128xf32> -> vector<32x128xf32>
    %c0_3 = arith.constant 0 : index
    %c0_4 = arith.constant 0 : index
    %3 = vector.load %arg3[%c0_3, %c0_4] : memref<32x1xf32, #tpu.memory_space<vmem>>, vector<32x1xf32>
    %4 = vector.broadcast %3 : vector<32x1xf32> to vector<32x128xf32>
    %5 = arith.addf %2, %4 : vector<32x128xf32>
    %cst_5 = arith.constant 0.000000e+00 : f32
    %6 = vector.broadcast %cst_5 : f32 to vector<32x128xf32>
    %7 = arith.maximumf %5, %6 : vector<32x128xf32>
    %c0_6 = arith.constant 0 : index
    %c0_7 = arith.constant 0 : index
    %8 = vector.load %arg4[%c0_6, %c0_7] : memref<32x32xf32, #tpu.memory_space<vmem>>, vector<32x32xf32>
    %cst_8 = arith.constant dense<0.000000e+00> : vector<32x128xf32>
    %9 = tpu.matmul %8, %7, %cst_8 {dimension_numbers = #tpu.dot_dimension_numbers<[1], [0], [0], [1], [0, 0, 1, 1], [], []>} : vector<32x32xf32>, vector<32x128xf32>, vector<32x128xf32> -> vector<32x128xf32>
    %c0_9 = arith.constant 0 : index
    %c0_10 = arith.constant 0 : index
    %10 = vector.load %arg5[%c0_9, %c0_10] : memref<32x1xf32, #tpu.memory_space<vmem>>, vector<32x1xf32>
    %11 = vector.broadcast %10 : vector<32x1xf32> to vector<32x128xf32>
    %12 = arith.addf %9, %11 : vector<32x128xf32>
    %cst_11 = arith.constant 0.000000e+00 : f32
    %13 = vector.broadcast %cst_11 : f32 to vector<32x128xf32>
    %14 = arith.maximumf %12, %13 : vector<32x128xf32>
    %c0_12 = arith.constant 0 : index
    %c0_13 = arith.constant 0 : index
    %15 = vector.load %arg6[%c0_12, %c0_13] : memref<32x1xf32, #tpu.memory_space<vmem>>, vector<32x1xf32>
    %16 = vector.broadcast %15 : vector<32x1xf32> to vector<32x128xf32>
    %17 = arith.mulf %14, %16 : vector<32x128xf32>
    %cst_14 = arith.constant dense<0.000000e+00> : vector<128xf32>
    %18 = vector.multi_reduction <add>, %17, %cst_14 [0] : vector<32x128xf32> to vector<128xf32>
    %19 = vector.shape_cast %18 : vector<128xf32> to vector<1x128xf32>
    %c0_15 = arith.constant 0 : index
    %c0_16 = arith.constant 0 : index
    %20 = memref.load %arg7[%c0_15, %c0_16] : memref<1x1xf32, #tpu.memory_space<smem>>
    %21 = vector.broadcast %20 : f32 to vector<1x128xf32>
    %22 = arith.addf %19, %21 : vector<1x128xf32>
    %c0_17 = arith.constant 0 : index
    %c0_18 = arith.constant 0 : index
    %23 = vector.load %arg8[%c0_17, %c0_18] : memref<1x128xf32, #tpu.memory_space<vmem>>, vector<1x128xf32>
    tpu.vector_store %arg8[%c0_17, %c0_18], %22 {strides = array<i32>} : memref<1x128xf32, #tpu.memory_space<vmem>>, vector<1x128xf32>,
    return
  }
  func.func @transform_0(%arg0: i32) -> (i32, i32) {
    %c0_i32 = arith.constant 0 : i32
    %c0_i32_0 = arith.constant 0 : i32
    return %arg0, %c0_i32 : i32, i32
  }
  func.func @transform_1(%arg0: i32) -> (i32, i32) {
    %c0_i32 = arith.constant 0 : i32
    %c0_i32_0 = arith.constant 0 : i32
    %c0_i32_1 = arith.constant 0 : i32
    return %c0_i32, %c0_i32_0 : i32, i32
  }
  func.func @transform_2(%arg0: i32) -> (i32, i32) {
    %c0_i32 = arith.constant 0 : i32
    %c0_i32_0 = arith.constant 0 : i32
    %c0_i32_1 = arith.constant 0 : i32
    return %c0_i32, %c0_i32_0 : i32, i32
  }
  func.func @transform_3(%arg0: i32) -> (i32, i32) {
    %c0_i32 = arith.constant 0 : i32
    %c0_i32_0 = arith.constant 0 : i32
    %c0_i32_1 = arith.constant 0 : i32
    return %c0_i32, %c0_i32_0 : i32, i32
  }
  func.func @transform_4(%arg0: i32) -> (i32, i32) {
    %c0_i32 = arith.constant 0 : i32
    %c0_i32_0 = arith.constant 0 : i32
    %c0_i32_1 = arith.constant 0 : i32
    return %c0_i32, %c0_i32_0 : i32, i32
  }
  func.func @transform_5(%arg0: i32) -> (i32, i32) {
    %c0_i32 = arith.constant 0 : i32
    %c0_i32_0 = arith.constant 0 : i32
    %c0_i32_1 = arith.constant 0 : i32
    return %c0_i32, %c0_i32_0 : i32, i32
  }
  func.func @transform_6(%arg0: i32) -> (i32, i32) {
    %c0_i32 = arith.constant 0 : i32
    %c0_i32_0 = arith.constant 0 : i32
    %c0_i32_1 = arith.constant 0 : i32
    return %c0_i32, %c0_i32_0 : i32, i32
  }
  func.func @transform_7(%arg0: i32) -> (i32, i32) {
    %c0_i32 = arith.constant 0 : i32
    %c0_i32_0 = arith.constant 0 : i32
    return %c0_i32, %arg0 : i32, i32
  }
}

</mosaic_0001>

<llo_original>
// kernel: tpu_custom_call.1
$region0: #{tpu_custom_call.1}
  #allocation0 [shape = 'u32[]', space=smem, size = 0x4, offset = 0x4, fixed_abs, tag = 'smem constant byte address 0x4 - core index']
  #allocation1 [shape = 'u32[144,128]{1,0:T(1,128)}', space=vmem, size = 0x12000, scoped, tag = 'internal scratch']
  #allocation2 [shape = 'f32[1,1]{1,0:T(1,128)S(6)}', space=smem, size = 0x200, scoped, tag = 'scoped memory for tpu_custom_call.1']
  %s0 = inlined_call_operand.vmem [shape: f32[8,16], index: 0, kind: input, shape index: {}]
  %s1 = inlined_call_operand.vmem [shape: f32[32,16], index: 1, kind: input, shape index: {}]
  %s2 = inlined_call_operand.vmem [shape: f32[32,1], index: 2, kind: input, shape index: {}]
  %s3 = inlined_call_operand.vmem [shape: f32[32,32], index: 3, kind: input, shape index: {}]
  %s4 = inlined_call_operand.vmem [shape: f32[32,1], index: 4, kind: input, shape index: {}]
  %s5 = inlined_call_operand.vmem [shape: f32[32,1], index: 5, kind: input, shape index: {}]
  %s6 = inlined_call_operand.<no memory space> [shape: f32[1,1], index: 6, kind: input, shape index: {}]
  %s7 = inlined_call_operand.hbm [shape: f32[1,8], index: 7, kind: output, shape index: {}]
  %s8 = sld [smem:[#allocation0]]
  $region38: #{tpu_custom_call.1} parent=0
    _
  %s10 = ssub.s32 1, %s8
  %s11 = scalar_select 0, %s10, %s8
  %12 = sst [smem:[#allocation2]] %s6
  $region1: #{tpu_custom_call.1} parent=0
    #allocation3 [shape = 'u8[512]{0}', space=vmem, size = 0x400, scoped, tag = 'output window, operand 0, single buffered']
    #allocation4 [shape = 's32[1]{0}', space=sflag, size = 0x4, scoped, tag = 'scoped memory for tpu_custom_call.1']
    %13 = vsyncpa [#allocation4], 0
    // Predicated region
    $region2: #{tpu_custom_call.1} parent=1 // pred_check
      _
    $region3: #{tpu_custom_call.1} parent=1 // pred_check_branch
      %15 = sbr.rel (0) target = $region5
    $region4: #{tpu_custom_call.1} parent=1 // pred_region
      _
    $region5: #{tpu_custom_call.1} parent=1 // pred_fallthru
      _
    // Predicated region
    $region6: #{tpu_custom_call.1} parent=1 // pred_check
      _
    $region7: #{tpu_custom_call.1} parent=1 // pred_check_branch
      %17 = sbr.rel (0) target = $region9
    $region8: #{tpu_custom_call.1} parent=1 // pred_region
      _
    $region9: #{tpu_custom_call.1} parent=1 // pred_fallthru
      _
    // Predicated region
    $region10: #{tpu_custom_call.1} parent=1 // pred_check
      _
    $region11: #{tpu_custom_call.1} parent=1 // pred_check_branch
      %19 = sbr.rel (0) target = $region13
    $region12: #{tpu_custom_call.1} parent=1 // pred_region
      _
    $region13: #{tpu_custom_call.1} parent=1 // pred_fallthru
      _
    // Predicated region
    $region14: #{tpu_custom_call.1} parent=1 // pred_check
      _
    $region15: #{tpu_custom_call.1} parent=1 // pred_check_branch
      %21 = sbr.rel (0) target = $region17
    $region16: #{tpu_custom_call.1} parent=1 // pred_region
      _
    $region17: #{tpu_custom_call.1} parent=1 // pred_fallthru
      _
    // Predicated region
    $region18: #{tpu_custom_call.1} parent=1 // pred_check
      _
    $region19: #{tpu_custom_call.1} parent=1 // pred_check_branch
      %23 = sbr.rel (0) target = $region21
    $region20: #{tpu_custom_call.1} parent=1 // pred_region
      _
    $region21: #{tpu_custom_call.1} parent=1 // pred_fallthru
      _
    // Predicated region
    $region22: #{tpu_custom_call.1} parent=1 // pred_check
      _
    $region23: #{tpu_custom_call.1} parent=1 // pred_check_branch
      %25 = sbr.rel (0) target = $region25
    $region24: #{tpu_custom_call.1} parent=1 // pred_region
      _
    $region25: #{tpu_custom_call.1} parent=1 // pred_fallthru
      _
    // Predicated region
    $region26: #{tpu_custom_call.1} parent=1 // pred_check
      _
    $region27: #{tpu_custom_call.1} parent=1 // pred_check_branch
      %27 = sbr.rel (0) target = $region29
    $region28: #{tpu_custom_call.1} parent=1 // pred_region
      _
    $region29: #{tpu_custom_call.1} parent=1 // pred_fallthru
      _
    %v28 = vld [vmem:[%s1] sm:$0xff]
    %v29 = vld [vmem:[%s1 + $0x8] sm:$0xff]
    %v30 = vld [vmem:[%s1 + $0x10] sm:$0xff]
    %v31 = vld [vmem:[%s1 + $0x18] sm:$0xff]
    %v32 = vld [vmem:[%s0] sm:$0xff]
    %v33 = vld [vmem:[%s0 + $0x8] sm:$0xff]
    %v34 = vld [vmem:[%s0 + $0x10] sm:$0xff]
    %v35 = vld [vmem:[%s0 + $0x18] sm:$0xff]
    %v36 = vld [vmem:[%s0 + $0x20] sm:$0xff]
    %v37 = vld [vmem:[%s0 + $0x28] sm:$0xff]
    %v38 = vld [vmem:[%s0 + $0x30] sm:$0xff]
    %v39 = vld [vmem:[%s0 + $0x38] sm:$0xff]
    %v40 = vld [vmem:[%s0 + $0x40] sm:$0xff]
    %v41 = vld [vmem:[%s0 + $0x48] sm:$0xff]
    %v42 = vld [vmem:[%s0 + $0x50] sm:$0xff]
    %v43 = vld [vmem:[%s0 + $0x58] sm:$0xff]
    %v44 = vld [vmem:[%s0 + $0x60] sm:$0xff]
    %v45 = vld [vmem:[%s0 + $0x68] sm:$0xff]
    %v46 = vld [vmem:[%s0 + $0x70] sm:$0xff]
    %v47 = vld [vmem:[%s0 + $0x78] sm:$0xff]
    %v48 = vld [vmem:[%s2] sm:$0xff]
    %v49 = vld [vmem:[%s2 + $0x8] sm:$0xff]
    %v50 = vld [vmem:[%s2 + $0x10] sm:$0xff]
    %v51 = vld [vmem:[%s2 + $0x18] sm:$0xff]
    %53 = vset.pattern.permute.xlu0 0
    %54 = vperm.xlu0 %53, %v48
    %v55 = vpop.permute.xlu0 %54
    %58 = vset.pattern.permute.xlu0 0
    %59 = vperm.xlu0 %58, %v49
    %v60 = vpop.permute.xlu0 %59
    %63 = vset.pattern.permute.xlu0 0
    %64 = vperm.xlu0 %63, %v50
    %v65 = vpop.permute.xlu0 %64
    %68 = vset.pattern.permute.xlu0 0
    %69 = vperm.xlu0 %68, %v51
    %v70 = vpop.permute.xlu0 %69
    %vm72 = vcmask 130048
    %v74 = vsel %vm72, %v28, 0
    %v77 = vsel %vm72, %v29, 0
    %v80 = vsel %vm72, %v30, 0
    %v83 = vsel %vm72, %v31, 0
    %v86 = vsel %vm72, %v32, 0
    %v89 = vsel %vm72, %v33, 0
    %v92 = vsel %vm72, %v34, 0
    %v95 = vsel %vm72, %v35, 0
    %v98 = vsel %vm72, %v36, 0
    %v101 = vsel %vm72, %v37, 0
    %v104 = vsel %vm72, %v38, 0
    %v107 = vsel %vm72, %v39, 0
    %v110 = vsel %vm72, %v40, 0
    %v113 = vsel %vm72, %v41, 0
    %v116 = vsel %vm72, %v42, 0
    %v119 = vsel %vm72, %v43, 0
    %v122 = vsel %vm72, %v44, 0
    %v125 = vsel %vm72, %v45, 0
    %v128 = vsel %vm72, %v46, 0
    %v131 = vsel %vm72, %v47, 0
    %133 = vmatprep.subr.mxu0 0.0
    %134 = vmatpush1.xpose.msra.mxu0 %v131
    %135 = vmatprep.subr.mxu0 0.0
    %136 = vmatpush1.xpose.msra.mxu0 %v128
    %137 = vmatprep.subr.mxu0 0.0
    %138 = vmatpush1.xpose.msra.mxu0 %v125
    %139 = vmatprep.subr.mxu0 0.0
    %140 = vmatpush1.xpose.msra.mxu0 %v122
    %141 = vmatprep.subr.mxu0 0.0
    %142 = vmatpush1.xpose.msra.mxu0 %v119
    %143 = vmatprep.subr.mxu0 0.0
    %144 = vmatpush1.xpose.msra.mxu0 %v116
    %145 = vmatprep.subr.mxu0 0.0
    %146 = vmatpush1.xpose.msra.mxu0 %v113
    %147 = vmatprep.subr.mxu0 0.0
    %148 = vmatpush1.xpose.msra.mxu0 %v110
    %149 = vmatprep.subr.mxu0 0.0
    %150 = vmatpush1.xpose.msra.mxu0 %v107
    %151 = vmatprep.subr.mxu0 0.0
    %152 = vmatpush1.xpose.msra.mxu0 %v104
    %153 = vmatprep.subr.mxu0 0.0
    %154 = vmatpush1.xpose.msra.mxu0 %v101
    %155 = vmatprep.subr.mxu0 0.0
    %156 = vmatpush1.xpose.msra.mxu0 %v98
    %157 = vmatprep.subr.mxu0 0.0
    %158 = vmatpush1.xpose.msra.mxu0 %v95
    %159 = vmatprep.subr.mxu0 0.0
    %160 = vmatpush1.xpose.msra.mxu0 %v92
    %161 = vmatprep.subr.mxu0 0.0
    %162 = vmatpush1.xpose.msra.mxu0 %v89
    %163 = vmatprep.subr.mxu0 0.0
    %164 = vmatpush1.xpose.msra.mxu0 %v86
    %165 = vmatprep.subr.mxu0 0.0
    %166 = vmatpush2.xpose.msra.mxu0 0.0
    %167 = vmatprep.subr.mxu0 0.0
    %168 = vmatpush2.xpose.msra.mxu0 0.0
    %169 = vmatprep.subr.mxu0 0.0
    %170 = vmatpush2.xpose.msra.mxu0 0.0
    %171 = vmatprep.subr.mxu0 0.0
    %172 = vmatpush2.xpose.msra.mxu0 0.0
    %173 = vmatprep.subr.mxu0 0.0
    %174 = vmatpush2.xpose.msra.mxu0 0.0
    %175 = vmatprep.subr.mxu0 0.0
    %176 = vmatpush2.xpose.msra.mxu0 0.0
    %177 = vmatprep.subr.mxu0 0.0
    %178 = vmatpush2.xpose.msra.mxu0 0.0
    %179 = vmatprep.subr.mxu0 0.0
    %180 = vmatpush2.xpose.msra.mxu0 0.0
    %181 = vmatprep.subr.mxu0 0.0
    %182 = vmatpush2.xpose.msra.mxu0 0.0
    %183 = vmatprep.subr.mxu0 0.0
    %184 = vmatpush2.xpose.msra.mxu0 0.0
    %185 = vmatprep.subr.mxu0 0.0
    %186 = vmatpush2.xpose.msra.mxu0 0.0
    %187 = vmatprep.subr.mxu0 0.0
    %188 = vmatpush2.xpose.msra.mxu0 0.0
    %189 = vmatprep.subr.mxu0 0.0
    %190 = vmatpush2.xpose.msra.mxu0 0.0
    %191 = vmatprep.subr.mxu0 0.0
    %192 = vmatpush2.xpose.msra.mxu0 0.0
    %193 = vmatprep.subr.mxu0 0.0
    %194 = vmatpush2.xpose.msra.mxu0 0.0
    %195 = vmatprep.subr.mxu0 0.0
    %196 = vmatpush2.xpose.msra.mxu0 0.0
    %197 = vmatprep.mubr.f32.mxu0 0.0
    %198 = vmatmul.mubr.f32.gmra.mxu0 %v74
    %v199 = vpop.f32.mrf.mxu0
    %v200 = vadd.f32 %v55, %v199
    %v201 = vpop.f32.mrf.mxu0
    %202 = vmatprep.mubr.f32.mxu0 0.0
    %203 = vmatmul.mubr.f32.gmra.mxu0 %v77
    %v204 = vpop.f32.mrf.mxu0
    %v205 = vadd.f32 %v60, %v204
    %v206 = vpop.f32.mrf.mxu0
    %207 = vmatprep.mubr.f32.mxu0 0.0
    %208 = vmatmul.mubr.f32.gmra.mxu0 %v80
    %v209 = vpop.f32.mrf.mxu0
    %v210 = vadd.f32 %v65, %v209
    %v211 = vpop.f32.mrf.mxu0
    %212 = vmatprep.mubr.f32.mxu0 0.0
    %213 = vmatmul.mubr.f32.gmra.mxu0 %v83
    %v214 = vpop.f32.mrf.mxu0
    %v215 = vadd.f32 %v70, %v214
    %v216 = vpop.f32.mrf.mxu0
    %217 = vdwg.mxu0
    %v218 = vmax.f32 %v200, 0.0
    %v219 = vmax.f32 %v205, 0.0
    %v220 = vmax.f32 %v210, 0.0
    %v221 = vmax.f32 %v215, 0.0
    %v222 = vld [vmem:[%s3] sm:$0xff]
    %v223 = vld [vmem:[%s3 + $0x8] sm:$0xff]
    %v224 = vld [vmem:[%s3 + $0x10] sm:$0xff]
    %v225 = vld [vmem:[%s3 + $0x18] sm:$0xff]
    %v226 = vld [vmem:[%s4] sm:$0xff]
    %v227 = vld [vmem:[%s4 + $0x8] sm:$0xff]
    %v228 = vld [vmem:[%s4 + $0x10] sm:$0xff]
    %v229 = vld [vmem:[%s4 + $0x18] sm:$0xff]
    %231 = vset.pattern.permute.xlu0 0
    %232 = vperm.xlu0 %231, %v226
    %v233 = vpop.permute.xlu0 %232
    %236 = vset.pattern.permute.xlu0 0
    %237 = vperm.xlu0 %236, %v227
    %v238 = vpop.permute.xlu0 %237
    %241 = vset.pattern.permute.xlu0 0
    %242 = vperm.xlu0 %241, %v228
    %v243 = vpop.permute.xlu0 %242
    %246 = vset.pattern.permute.xlu0 0
    %247 = vperm.xlu0 %246, %v229
    %v248 = vpop.permute.xlu0 %247
    %vm250 = vcmask 261120
    %v252 = vsel %vm250, %v222, 0
    %v255 = vsel %vm250, %v223, 0
    %v258 = vsel %vm250, %v224, 0
    %v261 = vsel %vm250, %v225, 0
    %263 = vmatprep.subr.mxu0 0.0
    %264 = vmatpush1.msra.mxu0 0.0
    %265 = vmatprep.subr.mxu0 0.0
    %266 = vmatpush1.msra.mxu0 0.0
    %267 = vmatprep.subr.mxu0 0.0
    %268 = vmatpush1.msra.mxu0 0.0
    %269 = vmatprep.subr.mxu0 0.0
    %270 = vmatpush1.msra.mxu0 0.0
    %271 = vmatprep.subr.mxu0 0.0
    %272 = vmatpush1.msra.mxu0 0.0
    %273 = vmatprep.subr.mxu0 0.0
    %274 = vmatpush1.msra.mxu0 0.0
    %275 = vmatprep.subr.mxu0 0.0
    %276 = vmatpush1.msra.mxu0 0.0
    %277 = vmatprep.subr.mxu0 0.0
    %278 = vmatpush1.msra.mxu0 0.0
    %279 = vmatprep.subr.mxu0 0.0
    %280 = vmatpush1.msra.mxu0 0.0
    %281 = vmatprep.subr.mxu0 0.0
    %282 = vmatpush1.msra.mxu0 0.0
    %283 = vmatprep.subr.mxu0 0.0
    %284 = vmatpush1.msra.mxu0 0.0
    %285 = vmatprep.subr.mxu0 0.0
    %286 = vmatpush1.msra.mxu0 0.0
    %287 = vmatprep.subr.mxu0 0.0
    %288 = vmatpush1.msra.mxu0 %v221
    %289 = vmatprep.subr.mxu0 0.0
    %290 = vmatpush1.msra.mxu0 %v220
    %291 = vmatprep.subr.mxu0 0.0
    %292 = vmatpush1.msra.mxu0 %v219
    %293 = vmatprep.subr.mxu0 0.0
    %294 = vmatpush1.msra.mxu0 %v218
    %295 = vmatprep.subr.mxu0 0.0
    %296 = vmatpush2.msra.mxu0 0.0
    %297 = vmatprep.subr.mxu0 0.0
    %298 = vmatpush2.msra.mxu0 0.0
    %299 = vmatprep.subr.mxu0 0.0
    %300 = vmatpush2.msra.mxu0 0.0
    %301 = vmatprep.subr.mxu0 0.0
    %302 = vmatpush2.msra.mxu0 0.0
    %303 = vmatprep.subr.mxu0 0.0
    %304 = vmatpush2.msra.mxu0 0.0
    %305 = vmatprep.subr.mxu0 0.0
    %306 = vmatpush2.msra.mxu0 0.0
    %307 = vmatprep.subr.mxu0 0.0
    %308 = vmatpush2.msra.mxu0 0.0
    %309 = vmatprep.subr.mxu0 0.0
    %310 = vmatpush2.msra.mxu0 0.0
    %311 = vmatprep.subr.mxu0 0.0
    %312 = vmatpush2.msra.mxu0 0.0
    %313 = vmatprep.subr.mxu0 0.0
    %314 = vmatpush2.msra.mxu0 0.0
    %315 = vmatprep.subr.mxu0 0.0
    %316 = vmatpush2.msra.mxu0 0.0
    %317 = vmatprep.subr.mxu0 0.0
    %318 = vmatpush2.msra.mxu0 0.0
    %319 = vmatprep.subr.mxu0 0.0
    %320 = vmatpush2.msra.mxu0 0.0
    %321 = vmatprep.subr.mxu0 0.0
    %322 = vmatpush2.msra.mxu0 0.0
    %323 = vmatprep.subr.mxu0 0.0
    %324 = vmatpush2.msra.mxu0 0.0
    %325 = vmatprep.subr.mxu0 0.0
    %326 = vmatpush2.msra.mxu0 0.0
    %327 = vmatprep.mubr.f32.mxu0 0.0
    %328 = vmatmul.mubr.f32.gmra.mxu0 %v252
    %v329 = vpop.f32.mrf.mxu0
    %v330 = vadd.f32 %v233, %v329
    %v331 = vpop.f32.mrf.mxu0
    %332 = vmatprep.mubr.f32.mxu0 0.0
    %333 = vmatmul.mubr.f32.gmra.mxu0 %v255
    %v334 = vpop.f32.mrf.mxu0
    %v335 = vadd.f32 %v238, %v334
    %v336 = vpop.f32.mrf.mxu0
    %337 = vmatprep.mubr.f32.mxu0 0.0
    %338 = vmatmul.mubr.f32.gmra.mxu0 %v258
    %v339 = vpop.f32.mrf.mxu0
    %v340 = vadd.f32 %v243, %v339
    %v341 = vpop.f32.mrf.mxu0
    %342 = vmatprep.mubr.f32.mxu0 0.0
    %343 = vmatmul.mubr.f32.gmra.mxu0 %v261
    %v344 = vpop.f32.mrf.mxu0
    %v345 = vadd.f32 %v248, %v344
    %v346 = vpop.f32.mrf.mxu0
    %347 = vdwg.mxu0
    %v348 = vmax.f32 %v330, 0.0
    %v349 = vmax.f32 %v335, 0.0
    %v350 = vmax.f32 %v340, 0.0
    %v351 = vmax.f32 %v345, 0.0
    %v352 = vld [vmem:[%s5] sm:$0xff]
    %v353 = vld [vmem:[%s5 + $0x8] sm:$0xff]
    %v354 = vld [vmem:[%s5 + $0x10] sm:$0xff]
    %v355 = vld [vmem:[%s5 + $0x18] sm:$0xff]
    %357 = vset.pattern.permute.xlu0 0
    %358 = vperm.xlu0 %357, %v352
    %v359 = vpop.permute.xlu0 %358
    %362 = vset.pattern.permute.xlu0 0
    %363 = vperm.xlu0 %362, %v353
    %v364 = vpop.permute.xlu0 %363
    %367 = vset.pattern.permute.xlu0 0
    %368 = vperm.xlu0 %367, %v354
    %v369 = vpop.permute.xlu0 %368
    %372 = vset.pattern.permute.xlu0 0
    %373 = vperm.xlu0 %372, %v355
    %v374 = vpop.permute.xlu0 %373
    %v376 = vmul.f32 %v348, %v359
    %v377 = vmul.f32 %v349, %v364
    %v378 = vmul.f32 %v350, %v369
    %v379 = vmul.f32 %v351, %v374
    %v380 = vadd.f32 %v376, %v377
    %v381 = vadd.f32 %v380, %v378
    %v382 = vadd.f32 %v381, %v379
    %v383 = vrot.slane %v382, 4
    %v384 = vadd.f32 %v382, %v383
    %v385 = vrot.slane %v384, 2
    %v386 = vadd.f32 %v384, %v385
    %v387 = vrot.slane %v386, 1
    %v388 = vadd.f32 %v386, %v387
    %s389 = sld [smem:[#allocation2]]
    %v390 = vstv %s389
    %v391 = vadd.f32 %v388, %v390
    %392 = vst [vmem:[#allocation3] sm:$0x1] %v391
    // Predicated region
    $region30: #{tpu_custom_call.1} parent=1 // pred_check
      _
    $region31: #{tpu_custom_call.1} parent=1 // pred_check_branch
      %394 = sbr.rel (0) target = $region33
    $region32: #{tpu_custom_call.1} parent=1 // pred_region
      %s396 = ssub.s32 16, 16
      %397 = vsyncadd [#allocation4], %s396
      %s399 = sshll.u32 [#allocation3], 4
      %s400 = int_to_ptr.vmem [resolvable:$true] %s399
      %402 = dma.vmem_to_hbm [thread:$0]  %s400, 16, %s7, [#allocation4]
    $region33: #{tpu_custom_call.1} parent=1 // pred_fallthru
      _
    // Predicated region
    $region34: #{tpu_custom_call.1} parent=1 // pred_check
      _
    $region35: #{tpu_custom_call.1} parent=1 // pred_check_branch
      %404 = sbr.rel (0) target = $region37
    $region36: #{tpu_custom_call.1} parent=1 // pred_region
      %405 = dma.done [#allocation4], 16
    $region37: #{tpu_custom_call.1} parent=1 // pred_fallthru
      _
    %406 = vsyncpa [#allocation4], 1

</llo_original>
